<compile_context>
chip_gen: v7x
topology: tpu7x:2x2x1
jax: 0.10.0
libtpu: 0.0.40
codegen_flags: <defaults>
</compile_context>

<pallas_src>
import collections
import functools

import jax
import jax.numpy as jnp
from jax.experimental import pallas as pl
from jax.experimental.pallas import tpu as pltpu

BN_EPS = 1e-5
LANE = 128
SUBLANE = 8


def _round_up(x, n):
    return (x + n - 1) // n * n


def _num_tensorcores():
    """2 on v7x (2 TensorCores/chip), else 1 (conservative default)."""
    try:
        kind = jax.devices()[0].device_kind.lower()
        if "v7" in kind:
            return 2
    except Exception:
        pass
    return 1


def _pick_tiling(m, num_tc):
    """Return (tile_m, m_pad). tile_m is a multiple of 8 or equals m_pad."""
    if m <= 512 * num_tc:
        if num_tc >= 2 and m >= 16:
            # Balanced, even split across both TensorCores.
            tile = _round_up(-(-m // num_tc), SUBLANE)
            return tile, num_tc * tile
        # Single-TC chip (or tiny batch): one tile, zero batch padding.
        return m, m
    # Large batch: pick the candidate tile minimizing padding; keep the tile
    # count a multiple of the TensorCore count so megacore sharding balances.
    best = None
    for tile in (512, 448, 384, 320, 256, 192, 128):
        n_tiles = _round_up(-(-m // tile), num_tc)
        m_pad = n_tiles * tile
        if best is None or m_pad < best[1]:
            best = (tile, m_pad)
    return best


def _sub_splits(tile_m):
    """Static row ranges splitting a tile into 2 independent sub-tiles (8-row
    aligned) so the scheduler can overlap one sub-tile's MXU matmul with the
    other's EUP tanh / VPU scale+shift."""
    if tile_m >= 16:
        h = _round_up(tile_m // 2, SUBLANE)
        if 0 < h < tile_m:
            return ((0, h), (h, tile_m))
    return ((0, tile_m),)


def _resident_spec(shape, single_buffer):
    """BlockSpec for an input whose index_map is constant over the grid.
    When large, request single buffering (default double-buffering would waste
    VMEM on a block that never changes)."""
    index_map = lambda *_: (0,) * len(shape)
    if single_buffer:
        try:
            return pl.BlockSpec(shape, index_map, pipeline_mode=pl.Buffered(1))
        except Exception:  # pipeline_mode / Buffered unavailable -> default
            pass
    return pl.BlockSpec(shape, index_map)


def _fused_block_kernel(x_ref, *refs, num_layers, sub_splits, mm_dtype, precision):
    """All layers for one batch tile, fully resident in VMEM/vregs.

    x_ref         : (TM, F)                raw (feature-unpadded) input tile
    refs[l]       : (in_pad_l, out_pad_l)  weight for layer l (mm_dtype)
    refs[L + l]   : (8, out_pad_l)         row0 bias, row1 BN scale, row2 BN shift (f32)
    refs[2L]      : (TM, out_pad_{L-1})    output tile
    """
    w_refs = refs[:num_layers]
    v_refs = refs[num_layers:2 * num_layers]
    o_ref = refs[2 * num_layers]

    x = x_ref[...].astype(jnp.float32)
    acts = [x[lo:hi] for (lo, hi) in sub_splits]     # independent sub-tiles

    for l in range(num_layers):                      # static unroll (L small)
        w = w_refs[l][...]                           # already mm_dtype
        v = v_refs[l][...]
        bias, scale, shift = v[0:1, :], v[1:2, :], v[2:3, :]
        nxt = []
        for a in acts:
            y = jnp.dot(a.astype(mm_dtype), w,
                        preferred_element_type=jnp.float32,
                        precision=precision)          # MXU, f32 accumulate
            y = jnp.tanh(y + bias)                    # EUP, f32
            nxt.append(y * scale + shift)             # VPU: folded eval BN
        acts = nxt

    for (lo, hi), a in zip(sub_splits, acts):
        o_ref[lo:hi, :] = a.astype(o_ref.dtype)


class LinearBlockPallas:
    """JAX/Pallas re-implementation of the PyTorch LinearBlock (eval mode)."""

    def __init__(self, input_size, linear_conf, key, use_bf16=True):
        sizes = [s for (s, _rate) in linear_conf.values()]
        self.num_layers = len(sizes)
        self.in_features = input_size
        self._out_features = sizes[-1]
        self.use_bf16 = use_bf16
        self.mm_dtype = jnp.bfloat16 if use_bf16 else jnp.float32
        self.num_tc = _num_tensorcores()

        # Per-layer padded output widths; first layer contracts over raw F.
        self.out_pads = [_round_up(s, LANE) for s in sizes]
        in_dims = [input_size] + self.out_pads[:-1]

        self.weights = []      # (in_dims[l], out_pads[l]) in mm_dtype
        self.vectors = []      # (8, out_pads[l]) f32: bias / scale / shift
        self.raw_params = []   # unpadded f32 params for the pure-JAX reference
        prev_s = input_size
        for l, s in enumerate(sizes):
            key, kw, kb, kg, kbe, km, kv = jax.random.split(key, 7)
            bound = 1.0 / (prev_s ** 0.5)      # nn.Linear default init
            w = jax.random.uniform(kw, (prev_s, s), jnp.float32, -bound, bound)
            b = jax.random.uniform(kb, (s,), jnp.float32, -bound, bound)
            gamma = 1.0 + 0.1 * jax.random.normal(kg, (s,), jnp.float32)
            beta = 0.1 * jax.random.normal(kbe, (s,), jnp.float32)
            mean = 0.1 * jax.random.normal(km, (s,), jnp.float32)
            var = jax.random.uniform(kv, (s,), jnp.float32, 0.5, 1.5)
            self.raw_params.append((w, b, gamma, beta, mean, var))

            # Fold eval-mode BatchNorm into scale/shift; pad lanes stay zero so
            # padded activation lanes remain exactly 0 into the next layer.
            scale = gamma * jax.lax.rsqrt(var + BN_EPS)
            shift = beta - mean * scale
            w_pad = jnp.zeros((in_dims[l], self.out_pads[l]), jnp.float32)
            w_pad = w_pad.at[:prev_s, :s].set(w).astype(self.mm_dtype)
            v_pad = jnp.zeros((8, self.out_pads[l]), jnp.float32)
            v_pad = v_pad.at[0, :s].set(b).at[1, :s].set(scale).at[2, :s].set(shift)
            self.weights.append(w_pad)
            self.vectors.append(v_pad)
            prev_s = s

        self._resident_bytes = sum(int(a.size) * a.dtype.itemsize
                                   for a in self.weights + self.vectors)

    def out_features(self):
        return self._out_features

    @functools.partial(jax.jit, static_argnums=0)
    def __call__(self, x):
        M, F = x.shape
        L = self.num_layers
        out_pad = self.out_pads[-1]
        tile_m, m_pad = _pick_tiling(M, self.num_tc)
        splits = _sub_splits(tile_m)

        # Only pad batch rows when the tiling needs it; features stay unpadded
        # (block last dim == full array dim is always legal).
        x_in = x if m_pad == M else jnp.zeros((m_pad, F), x.dtype).at[:M].set(x)

        # VMEM budget: resident weights/vectors (single- or double-buffered),
        # double-buffered input/output tiles, plus live-activation headroom.
        single_buffer = self._resident_bytes > (1 << 20)
        resident = self._resident_bytes * (1 if single_buffer else 2)
        io_bytes = 2 * tile_m * (F + out_pad) * x.dtype.itemsize
        act_bytes = 4 * tile_m * max(self.out_pads) * 4
        needed = resident + io_bytes + act_bytes + (2 << 20)
        # 48 MiB cap keeps us under v7x's 64 MiB physical VMEM per TensorCore.
        vmem_limit = int(min(max(needed, 32 << 20), 48 << 20))

        precision = (jax.lax.Precision.DEFAULT if self.use_bf16
                     else jax.lax.Precision.HIGHEST)

        in_specs = [pl.BlockSpec((tile_m, F), lambda i: (i, 0))]
        in_specs += [_resident_spec(w.shape, single_buffer) for w in self.weights]
        in_specs += [_resident_spec(v.shape, single_buffer) for v in self.vectors]

        out = pl.pallas_call(
            functools.partial(_fused_block_kernel, num_layers=L,
                              sub_splits=splits, mm_dtype=self.mm_dtype,
                              precision=precision),
            out_shape=jax.ShapeDtypeStruct((m_pad, out_pad), x.dtype),
            grid_spec=pltpu.PrefetchScalarGridSpec(
                num_scalar_prefetch=0,
                grid=(m_pad // tile_m,),
                in_specs=in_specs,
                out_specs=pl.BlockSpec((tile_m, out_pad), lambda i: (i, 0)),
            ),
            compiler_params=pltpu.CompilerParams(
                dimension_semantics=("parallel",),
                vmem_limit_bytes=vmem_limit),
        )(x_in, *self.weights, *self.vectors)

        return out[:M, :self._out_features]


def _reference(block, x):
    """Pure-JAX f32 reference for the same inference-mode forward."""
    for (w, b, gamma, beta, mean, var) in block.raw_params:
        y = jnp.tanh(x @ w + b)
        x = (y - mean) / jnp.sqrt(var + BN_EPS) * gamma + beta
    return x


if __name__ == "__main__":
    key = jax.random.PRNGKey(0)
    k_params, k_x1, k_x2, k_x3 = jax.random.split(key, 4)

    # Two layers of the Linear -> Tanh -> BatchNorm1d -> Dropout stack.
    linear_conf = collections.OrderedDict([
        ("1", (64, 0.1)),
        ("2", (32, 0.2)),
    ])
    input_size = 32

    block = LinearBlockPallas(input_size, linear_conf, k_params)            # bf16 MXU path
    block_f32 = LinearBlockPallas(input_size, linear_conf, k_params,
                                  use_bf16=False)                           # strict f32 path

    # Case 1: batch = 8 (single tile, no padding anywhere).
    x1 = jax.random.normal(k_x1, (8, input_size), jnp.float32)
    ref1 = _reference(block, x1)
    out1 = jax.block_until_ready(block(x1))
    assert out1.shape == (8, block.out_features())
    assert jnp.allclose(out1, ref1, atol=5e-2, rtol=5e-2), \
        f"bf16 max err {jnp.max(jnp.abs(out1 - ref1))}"
    out1_f32 = jax.block_until_ready(block_f32(x1))
    assert jnp.allclose(out1_f32, ref1, atol=1e-5, rtol=1e-5), \
        f"f32 max err {jnp.max(jnp.abs(out1_f32 - ref1))}"

    # Case 2: batch = 12 (not a multiple of 8; full-dim tile, still no pad op).
    x2 = jax.random.normal(k_x2, (12, input_size), jnp.float32)
    ref2 = _reference(block, x2)
    out2 = jax.block_until_ready(block(x2))
    assert out2.shape == (12, block.out_features())
    assert jnp.allclose(out2, ref2, atol=5e-2, rtol=5e-2), \
        f"bf16 max err {jnp.max(jnp.abs(out2 - ref2))}"

    # Case 3: batch = 64 (exercises the 2-sub-tile MXU/EUP overlap and, on
    # 2-TensorCore chips, the balanced 2-tile grid).
    x3 = jax.random.normal(k_x3, (64, input_size), jnp.float32)
    ref3 = _reference(block, x3)
    out3 = jax.block_until_ready(block(x3))
    assert out3.shape == (64, block.out_features())
    assert jnp.allclose(out3, ref3, atol=5e-2, rtol=5e-2), \
        f"bf16 max err {jnp.max(jnp.abs(out3 - ref3))}"

    print("KERNEL_OK")
</pallas_src>

<mosaic_0001>
module attributes {stable_mosaic.version = 11 : i64} {
  func.func @_fused_block_kernel(%arg0: i32, %arg1: memref<8x32xf32, #tpu.memory_space<vmem>>, %arg2: memref<32x128xbf16, #tpu.memory_space<vmem>>, %arg3: memref<128x128xbf16, #tpu.memory_space<vmem>>, %arg4: memref<8x128xf32, #tpu.memory_space<vmem>>, %arg5: memref<8x128xf32, #tpu.memory_space<vmem>>, %arg6: memref<8x128xf32, #tpu.memory_space<vmem>>) attributes {dimension_semantics = [#tpu.dimension_semantics<parallel>], iteration_bounds = array<i64: 1>, scalar_prefetch = 0 : i64, scratch_operands = 0 : i64, tpu.core_type = #tpu.core_type<tc>, window_params = [{transform_indices = @transform_0, window_bounds = array<i64: 8, 32>}, {pipeline_mode = #tpu.pipeline_mode<synchronous>, transform_indices = @transform_1, window_bounds = array<i64: 32, 128>}, {pipeline_mode = #tpu.pipeline_mode<synchronous>, transform_indices = @transform_2, window_bounds = array<i64: 128, 128>}, {pipeline_mode = #tpu.pipeline_mode<synchronous>, transform_indices = @transform_3, window_bounds = array<i64: 8, 128>}, {pipeline_mode = #tpu.pipeline_mode<synchronous>, transform_indices = @transform_4, window_bounds = array<i64: 8, 128>}, {transform_indices = @transform_5, window_bounds = array<i64: 8, 128>}]} {
    %c0 = arith.constant 0 : index
    %c0_0 = arith.constant 0 : index
    %0 = vector.load %arg1[%c0, %c0_0] : memref<8x32xf32, #tpu.memory_space<vmem>>, vector<8x32xf32>
    %c0_1 = arith.constant 0 : index
    %c0_2 = arith.constant 0 : index
    %1 = vector.load %arg2[%c0_1, %c0_2] : memref<32x128xbf16, #tpu.memory_space<vmem>>, vector<32x128xbf16>
    %c0_3 = arith.constant 0 : index
    %c0_4 = arith.constant 0 : index
    %2 = vector.load %arg4[%c0_3, %c0_4] : memref<8x128xf32, #tpu.memory_space<vmem>>, vector<8x128xf32>
    %3 = vector.extract_strided_slice %2 {offsets = [0, 0], sizes = [1, 128], strides = [1, 1]} : vector<8x128xf32> to vector<1x128xf32>
    %4 = vector.extract_strided_slice %2 {offsets = [1, 0], sizes = [1, 128], strides = [1, 1]} : vector<8x128xf32> to vector<1x128xf32>
    %5 = vector.extract_strided_slice %2 {offsets = [2, 0], sizes = [1, 128], strides = [1, 1]} : vector<8x128xf32> to vector<1x128xf32>
    %6 = arith.truncf %0 : vector<8x32xf32> to vector<8x32xbf16>
    %cst = arith.constant dense<0.000000e+00> : vector<8x128xf32>
    %7 = tpu.matmul %6, %1, %cst {dimension_numbers = #tpu.dot_dimension_numbers<[1], [0], [0], [1], [0, 0, 1, 1], [], []>} : vector<8x32xbf16>, vector<32x128xbf16>, vector<8x128xf32> -> vector<8x128xf32>
    %8 = vector.broadcast %3 : vector<1x128xf32> to vector<8x128xf32>
    %9 = arith.addf %7, %8 : vector<8x128xf32>
    %10 = math.tanh %9 : vector<8x128xf32>
    %11 = vector.broadcast %4 : vector<1x128xf32> to vector<8x128xf32>
    %12 = arith.mulf %10, %11 : vector<8x128xf32>
    %13 = vector.broadcast %5 : vector<1x128xf32> to vector<8x128xf32>
    %14 = arith.addf %12, %13 : vector<8x128xf32>
    %c0_5 = arith.constant 0 : index
    %c0_6 = arith.constant 0 : index
    %15 = vector.load %arg3[%c0_5, %c0_6] : memref<128x128xbf16, #tpu.memory_space<vmem>>, vector<128x128xbf16>
    %c0_7 = arith.constant 0 : index
    %c0_8 = arith.constant 0 : index
    %16 = vector.load %arg5[%c0_7, %c0_8] : memref<8x128xf32, #tpu.memory_space<vmem>>, vector<8x128xf32>
    %17 = vector.extract_strided_slice %16 {offsets = [0, 0], sizes = [1, 128], strides = [1, 1]} : vector<8x128xf32> to vector<1x128xf32>
    %18 = vector.extract_strided_slice %16 {offsets = [1, 0], sizes = [1, 128], strides = [1, 1]} : vector<8x128xf32> to vector<1x128xf32>
    %19 = vector.extract_strided_slice %16 {offsets = [2, 0], sizes = [1, 128], strides = [1, 1]} : vector<8x128xf32> to vector<1x128xf32>
    %20 = arith.truncf %14 : vector<8x128xf32> to vector<8x128xbf16>
    %cst_9 = arith.constant dense<0.000000e+00> : vector<8x128xf32>
    %21 = tpu.matmul %20, %15, %cst_9 {dimension_numbers = #tpu.dot_dimension_numbers<[1], [0], [0], [1], [0, 0, 1, 1], [], []>} : vector<8x128xbf16>, vector<128x128xbf16>, vector<8x128xf32> -> vector<8x128xf32>
    %22 = vector.broadcast %17 : vector<1x128xf32> to vector<8x128xf32>
    %23 = arith.addf %21, %22 : vector<8x128xf32>
    %24 = math.tanh %23 : vector<8x128xf32>
    %25 = vector.broadcast %18 : vector<1x128xf32> to vector<8x128xf32>
    %26 = arith.mulf %24, %25 : vector<8x128xf32>
    %27 = vector.broadcast %19 : vector<1x128xf32> to vector<8x128xf32>
    %28 = arith.addf %26, %27 : vector<8x128xf32>
    %c0_10 = arith.constant 0 : index
    %c0_11 = arith.constant 0 : index
    %29 = vector.load %arg6[%c0_10, %c0_11] : memref<8x128xf32, #tpu.memory_space<vmem>>, vector<8x128xf32>
    tpu.vector_store %arg6[%c0_10, %c0_11], %28 {strides = array<i32>} : memref<8x128xf32, #tpu.memory_space<vmem>>, vector<8x128xf32>,
    return
  }
  func.func @transform_0(%arg0: i32) -> (i32, i32) {
    %c0_i32 = arith.constant 0 : i32
    %c0_i32_0 = arith.constant 0 : i32
    return %arg0, %c0_i32 : i32, i32
  }
  func.func @transform_1(%arg0: i32) -> (i32, i32) {
    %c0_i32 = arith.constant 0 : i32
    %c0_i32_0 = arith.constant 0 : i32
    %c0_i32_1 = arith.constant 0 : i32
    return %c0_i32, %c0_i32_0 : i32, i32
  }
  func.func @transform_2(%arg0: i32) -> (i32, i32) {
    %c0_i32 = arith.constant 0 : i32
    %c0_i32_0 = arith.constant 0 : i32
    %c0_i32_1 = arith.constant 0 : i32
    return %c0_i32, %c0_i32_0 : i32, i32
  }
  func.func @transform_3(%arg0: i32) -> (i32, i32) {
    %c0_i32 = arith.constant 0 : i32
    %c0_i32_0 = arith.constant 0 : i32
    %c0_i32_1 = arith.constant 0 : i32
    return %c0_i32, %c0_i32_0 : i32, i32
  }
  func.func @transform_4(%arg0: i32) -> (i32, i32) {
    %c0_i32 = arith.constant 0 : i32
    %c0_i32_0 = arith.constant 0 : i32
    %c0_i32_1 = arith.constant 0 : i32
    return %c0_i32, %c0_i32_0 : i32, i32
  }
  func.func @transform_5(%arg0: i32) -> (i32, i32) {
    %c0_i32 = arith.constant 0 : i32
    %c0_i32_0 = arith.constant 0 : i32
    return %arg0, %c0_i32 : i32, i32
  }
}

</mosaic_0001>

<llo_original>
// kernel: a_call__.1
$region0: #{a_call__.1}
  #allocation0 [shape = 'u32[]', space=smem, size = 0x4, offset = 0x4, fixed_abs, tag = 'smem constant byte address 0x4 - core index']
  #allocation1 [shape = 'u32[144,128]{1,0:T(1,128)}', space=vmem, size = 0x12000, scoped, tag = 'internal scratch']
  %s0 = inlined_call_operand.hbm [shape: f32[8,32], index: 0, kind: input, shape index: {}]
  %s1 = inlined_call_operand.vmem [shape: bf16[32,128], index: 1, kind: input, shape index: {}]
  %s2 = inlined_call_operand.hbm [shape: bf16[128,128], index: 2, kind: input, shape index: {}]
  %s3 = inlined_call_operand.hbm [shape: f32[8,128], index: 3, kind: input, shape index: {}]
  %s4 = inlined_call_operand.hbm [shape: f32[8,128], index: 4, kind: input, shape index: {}]
  %s5 = inlined_call_operand.hbm [shape: f32[8,128], index: 5, kind: output, shape index: {}]
  %s6 = sld [smem:[#allocation0]]
  $region46: #{a_call__.1} parent=0
    _
  %s8 = ssub.s32 1, %s6
  %s9 = scalar_select 0, %s8, %s6
  $region1: #{a_call__.1} parent=0
    #allocation2 [shape = 'u8[4096]{0}', space=vmem, size = 0x1000, scoped, tag = 'input window, operand 0, single buffered']
    #allocation3 [shape = 's32[1]{0}', space=sflag, size = 0x4, scoped, tag = 'scoped memory for a_call__.1']
    #allocation4 [shape = 's32[1]{0}', space=sflag, size = 0x4, scoped, tag = 'scoped memory for a_call__.1']
    #allocation5 [shape = 'u8[32768]{0}', space=vmem, size = 0x8000, scoped, tag = 'input window, operand 2, single buffered']
    #allocation6 [shape = 's32[1]{0}', space=sflag, size = 0x4, scoped, tag = 'scoped memory for a_call__.1']
    #allocation7 [shape = 'u8[4096]{0}', space=vmem, size = 0x1000, scoped, tag = 'input window, operand 3, single buffered']
    #allocation8 [shape = 'u8[4096]{0}', space=vmem, size = 0x1000, scoped, tag = 'input window, operand 4, single buffered']
    #allocation9 [shape = 's32[1]{0}', space=sflag, size = 0x4, scoped, tag = 'scoped memory for a_call__.1']
    #allocation10 [shape = 'u8[4096]{0}', space=vmem, size = 0x1000, scoped, tag = 'output window, operand 0, single buffered']
    %10 = vsyncpa [#allocation3], 0
    %11 = vsyncpa [#allocation6], 0
    %12 = vsyncpa [#allocation9], 0
    %13 = vsyncpa [#allocation4], 0
    // Predicated region
    $region2: #{a_call__.1} parent=1 // pred_check
      _
    $region3: #{a_call__.1} parent=1 // pred_check_branch
      %15 = sbr.rel (0) target = $region5
    $region4: #{a_call__.1} parent=1 // pred_region
      %s17 = ssub.s32 128, 128
      %18 = vsyncadd [#allocation3], %s17
      %s20 = sshll.u32 [#allocation2], 4
      %s21 = int_to_ptr.vmem [resolvable:$true] %s20
      %23 = dma.hbm_to_vmem [thread:$0]  %s0, 128, %s21, [#allocation3]
    $region5: #{a_call__.1} parent=1 // pred_fallthru
      _
    // Predicated region
    $region6: #{a_call__.1} parent=1 // pred_check
      _
    $region7: #{a_call__.1} parent=1 // pred_check_branch
      %25 = sbr.rel (0) target = $region9
    $region8: #{a_call__.1} parent=1 // pred_region
      _
    $region9: #{a_call__.1} parent=1 // pred_fallthru
      _
    // Predicated region
    $region10: #{a_call__.1} parent=1 // pred_check
      _
    $region11: #{a_call__.1} parent=1 // pred_check_branch
      %27 = sbr.rel (0) target = $region13
    $region12: #{a_call__.1} parent=1 // pred_region
      %s29 = ssub.s32 1024, 1024
      %30 = vsyncadd [#allocation6], %s29
      %s31 = sshll.u32 [#allocation5], 4
      %s32 = int_to_ptr.vmem [resolvable:$true] %s31
      %37 = dma.hbm_to_vmem [thread:$0]  %s2, 1024, %s32, [#allocation6], 64, 64, 4
    $region13: #{a_call__.1} parent=1 // pred_fallthru
      _
    // Predicated region
    $region14: #{a_call__.1} parent=1 // pred_check
      _
    $region15: #{a_call__.1} parent=1 // pred_check_branch
      %39 = sbr.rel (0) target = $region17
    $region16: #{a_call__.1} parent=1 // pred_region
      %s41 = ssub.s32 128, 128
      %42 = vsyncadd [#allocation6], %s41
      %s44 = sshll.u32 [#allocation7], 4
      %s45 = int_to_ptr.vmem [resolvable:$true] %s44
      %47 = dma.hbm_to_vmem [thread:$0]  %s3, 128, %s45, [#allocation6]
    $region17: #{a_call__.1} parent=1 // pred_fallthru
      _
    // Predicated region
    $region18: #{a_call__.1} parent=1 // pred_check
      _
    $region19: #{a_call__.1} parent=1 // pred_check_branch
      %49 = sbr.rel (0) target = $region21
    $region20: #{a_call__.1} parent=1 // pred_region
      %s51 = ssub.s32 128, 128
      %52 = vsyncadd [#allocation9], %s51
      %s54 = sshll.u32 [#allocation8], 4
      %s55 = int_to_ptr.vmem [resolvable:$true] %s54
      %57 = dma.hbm_to_vmem [thread:$0]  %s4, 128, %s55, [#allocation9]
    $region21: #{a_call__.1} parent=1 // pred_fallthru
      _
    // Predicated region
    $region22: #{a_call__.1} parent=1 // pred_check
      _
    $region23: #{a_call__.1} parent=1 // pred_check_branch
      %59 = sbr.rel (0) target = $region25
    $region24: #{a_call__.1} parent=1 // pred_region
      %60 = dma.done [#allocation3], 128
    $region25: #{a_call__.1} parent=1 // pred_fallthru
      _
    // Predicated region
    $region26: #{a_call__.1} parent=1 // pred_check
      _
    $region27: #{a_call__.1} parent=1 // pred_check_branch
      %62 = sbr.rel (0) target = $region29
    $region28: #{a_call__.1} parent=1 // pred_region
      %63 = dma.done [#allocation6], 1024
    $region29: #{a_call__.1} parent=1 // pred_fallthru
      _
    // Predicated region
    $region30: #{a_call__.1} parent=1 // pred_check
      _
    $region31: #{a_call__.1} parent=1 // pred_check_branch
      %65 = sbr.rel (0) target = $region33
    $region32: #{a_call__.1} parent=1 // pred_region
      %66 = dma.done [#allocation6], 128
    $region33: #{a_call__.1} parent=1 // pred_fallthru
      _
    // Predicated region
    $region34: #{a_call__.1} parent=1 // pred_check
      _
    $region35: #{a_call__.1} parent=1 // pred_check_branch
      %68 = sbr.rel (0) target = $region37
    $region36: #{a_call__.1} parent=1 // pred_region
      %69 = dma.done [#allocation9], 128
    $region37: #{a_call__.1} parent=1 // pred_fallthru
      _
    %v71 = vld [vmem:[#allocation2] sm:$0xff]
    %v72 = vld [vmem:[%s1] sm:$0xf]
    %v73 = vld [vmem:[%s1 + $0x4] sm:$0xf]
    %v74 = vld [vmem:[%s1 + $0x8] sm:$0xf]
    %v75 = vld [vmem:[%s1 + $0xc] sm:$0xf]
    %v76 = vld [vmem:[#allocation7] sm:$0xff]
    %v77 = vpack.c.bf16 %v71, %v71
    %v78 = vlaneseq
    %v79 = vshrl.u32 %v78, 7
    %v80 = vsub.s32 0, %v79
    %v81 = vrot.slane %v76, %v80
    %v86 = vunpack.c.l.b16 %v72
    %v87 = vunpack.c.l.b16 %v73
    %v88 = vunpack.c.l.b16 %v74
    %v89 = vunpack.c.l.b16 %v75
    %v90 = vpack.c.b16 %v87, %v86
    %v91 = vpack.c.b16 %v89, %v88
    %vm94 = vcmask 261120
    %v96 = vsel %vm94, %v77, 0
    %98 = vmatprep.subr.bf16.mxu0 0
    %99 = vmatpush1.bf16.msra.mxu0 %v90
    %100 = vmatprep.subr.bf16.mxu0 0
    %101 = vmatpush1.bf16.msra.mxu0 %v91
    %102 = vmatprep.subr.bf16.mxu0 0
    %103 = vmatpush1.bf16.msra.mxu0 0
    %104 = vmatprep.subr.bf16.mxu0 0
    %105 = vmatpush1.bf16.msra.mxu0 0
    %106 = vmatprep.subr.bf16.mxu0 0
    %107 = vmatpush1.bf16.msra.mxu0 0
    %108 = vmatprep.subr.bf16.mxu0 0
    %109 = vmatpush1.bf16.msra.mxu0 0
    %110 = vmatprep.subr.bf16.mxu0 0
    %111 = vmatpush1.bf16.msra.mxu0 0
    %112 = vmatprep.subr.bf16.mxu0 0
    %113 = vmatpush1.bf16.msra.mxu0 0
    %114 = vmatprep.subr.bf16.mxu0 0
    %115 = vmatpush1.bf16.msra.mxu0 0
    %116 = vmatprep.subr.bf16.mxu0 0
    %117 = vmatpush1.bf16.msra.mxu0 0
    %118 = vmatprep.subr.bf16.mxu0 0
    %119 = vmatpush1.bf16.msra.mxu0 0
    %120 = vmatprep.subr.bf16.mxu0 0
    %121 = vmatpush1.bf16.msra.mxu0 0
    %122 = vmatprep.subr.bf16.mxu0 0
    %123 = vmatpush1.bf16.msra.mxu0 0
    %124 = vmatprep.subr.bf16.mxu0 0
    %125 = vmatpush1.bf16.msra.mxu0 0
    %126 = vmatprep.subr.bf16.mxu0 0
    %127 = vmatpush1.bf16.msra.mxu0 0
    %128 = vmatprep.subr.bf16.mxu0 0
    %129 = vmatpush1.bf16.msra.mxu0 0
    %130 = vmatprep.mubr.bf16.mxu0 0
    %131 = vmatmul.mubr.bf16.gmra.mrb[0].mxu0 %v96
    %v132 = vpop.f32.mrb[0].mxu0
    %v133 = vadd.f32 %v81, %v132
    %v134 = vpop.f32.mrb[0].mxu0
    %v135 = vpop.f32.mrb[0].mxu0
    %v136 = vpop.f32.mrb[0].mxu0
    %137 = vdwg.mxu0
    %v138 = vtanh.pop %v133
    %v139 = vlaneseq
    %v140 = vshrl.u32 %v139, 7
    %v141 = vsub.s32 1, %v140
    %v142 = vrot.slane %v76, %v141
    %v143 = vmul.f32 %v138, %v142
    %v144 = vlaneseq
    %v145 = vshrl.u32 %v144, 7
    %v146 = vsub.s32 2, %v145
    %v147 = vrot.slane %v76, %v146
    %v148 = vadd.f32 %v143, %v147
    %v149 = vld [vmem:[#allocation5] sm:$0xf]
    %v150 = vld [vmem:[#allocation5 + $0x4] sm:$0xf]
    %v151 = vld [vmem:[#allocation5 + $0x8] sm:$0xf]
    %v152 = vld [vmem:[#allocation5 + $0xc] sm:$0xf]
    %v153 = vld [vmem:[#allocation5 + $0x10] sm:$0xf]
    %v154 = vld [vmem:[#allocation5 + $0x14] sm:$0xf]
    %v155 = vld [vmem:[#allocation5 + $0x18] sm:$0xf]
    %v156 = vld [vmem:[#allocation5 + $0x1c] sm:$0xf]
    %v157 = vld [vmem:[#allocation5 + $0x20] sm:$0xf]
    %v158 = vld [vmem:[#allocation5 + $0x24] sm:$0xf]
    %v159 = vld [vmem:[#allocation5 + $0x28] sm:$0xf]
    %v160 = vld [vmem:[#allocation5 + $0x2c] sm:$0xf]
    %v161 = vld [vmem:[#allocation5 + $0x30] sm:$0xf]
    %v162 = vld [vmem:[#allocation5 + $0x34] sm:$0xf]
    %v163 = vld [vmem:[#allocation5 + $0x38] sm:$0xf]
    %v164 = vld [vmem:[#allocation5 + $0x3c] sm:$0xf]
    %v165 = vld [vmem:[#allocation8] sm:$0xff]
    %v166 = vpack.c.bf16 %v148, %v148
    %v167 = vlaneseq
    %v168 = vshrl.u32 %v167, 7
    %v169 = vsub.s32 0, %v168
    %v170 = vrot.slane %v165, %v169
    %v187 = vunpack.c.l.b16 %v149
    %v188 = vunpack.c.l.b16 %v150
    %v189 = vunpack.c.l.b16 %v151
    %v190 = vunpack.c.l.b16 %v152
    %v191 = vunpack.c.l.b16 %v153
    %v192 = vunpack.c.l.b16 %v154
    %v193 = vunpack.c.l.b16 %v155
    %v194 = vunpack.c.l.b16 %v156
    %v195 = vunpack.c.l.b16 %v157
    %v196 = vunpack.c.l.b16 %v158
    %v197 = vunpack.c.l.b16 %v159
    %v198 = vunpack.c.l.b16 %v160
    %v199 = vunpack.c.l.b16 %v161
    %v200 = vunpack.c.l.b16 %v162
    %v201 = vunpack.c.l.b16 %v163
    %v202 = vunpack.c.l.b16 %v164
    %v203 = vpack.c.b16 %v188, %v187
    %v204 = vpack.c.b16 %v190, %v189
    %v205 = vpack.c.b16 %v192, %v191
    %v206 = vpack.c.b16 %v194, %v193
    %v207 = vpack.c.b16 %v196, %v195
    %v208 = vpack.c.b16 %v198, %v197
    %v209 = vpack.c.b16 %v200, %v199
    %v210 = vpack.c.b16 %v202, %v201
    %219 = vmatprep.subr.bf16.mxu0 0
    %220 = vmatpush1.bf16.msra.mxu0 %v203
    %221 = vmatprep.subr.bf16.mxu0 0
    %222 = vmatpush1.bf16.msra.mxu0 %v204
    %223 = vmatprep.subr.bf16.mxu0 0
    %224 = vmatpush1.bf16.msra.mxu0 %v205
    %225 = vmatprep.subr.bf16.mxu0 0
    %226 = vmatpush1.bf16.msra.mxu0 %v206
    %227 = vmatprep.subr.bf16.mxu0 0
    %228 = vmatpush1.bf16.msra.mxu0 %v207
    %229 = vmatprep.subr.bf16.mxu0 0
    %230 = vmatpush1.bf16.msra.mxu0 %v208
    %231 = vmatprep.subr.bf16.mxu0 0
    %232 = vmatpush1.bf16.msra.mxu0 %v209
    %233 = vmatprep.subr.bf16.mxu0 0
    %234 = vmatpush1.bf16.msra.mxu0 %v210
    %235 = vmatprep.subr.bf16.mxu0 0
    %236 = vmatpush1.bf16.msra.mxu0 0
    %237 = vmatprep.subr.bf16.mxu0 0
    %238 = vmatpush1.bf16.msra.mxu0 0
    %239 = vmatprep.subr.bf16.mxu0 0
    %240 = vmatpush1.bf16.msra.mxu0 0
    %241 = vmatprep.subr.bf16.mxu0 0
    %242 = vmatpush1.bf16.msra.mxu0 0
    %243 = vmatprep.subr.bf16.mxu0 0
    %244 = vmatpush1.bf16.msra.mxu0 0
    %245 = vmatprep.subr.bf16.mxu0 0
    %246 = vmatpush1.bf16.msra.mxu0 0
    %247 = vmatprep.subr.bf16.mxu0 0
    %248 = vmatpush1.bf16.msra.mxu0 0
    %249 = vmatprep.subr.bf16.mxu0 0
    %250 = vmatpush1.bf16.msra.mxu0 0
    %251 = vmatprep.mubr.bf16.mxu0 0
    %252 = vmatmul.mubr.bf16.gmra.mrb[0].mxu0 %v166
    %v253 = vpop.f32.mrb[0].mxu0
    %v254 = vadd.f32 %v170, %v253
    %v255 = vpop.f32.mrb[0].mxu0
    %v256 = vpop.f32.mrb[0].mxu0
    %v257 = vpop.f32.mrb[0].mxu0
    %258 = vdwg.mxu0
    %v259 = vtanh.pop %v254
    %v260 = vlaneseq
    %v261 = vshrl.u32 %v260, 7
    %v262 = vsub.s32 1, %v261
    %v263 = vrot.slane %v165, %v262
    %v264 = vmul.f32 %v259, %v263
    %v265 = vlaneseq
    %v266 = vshrl.u32 %v265, 7
    %v267 = vsub.s32 2, %v266
    %v268 = vrot.slane %v165, %v267
    %v269 = vadd.f32 %v264, %v268
    %270 = vst [vmem:[#allocation10] sm:$0xff] %v269
    // Predicated region
    $region38: #{a_call__.1} parent=1 // pred_check
      _
    $region39: #{a_call__.1} parent=1 // pred_check_branch
      %272 = sbr.rel (0) target = $region41
    $region40: #{a_call__.1} parent=1 // pred_region
      %s274 = ssub.s32 128, 128
      %275 = vsyncadd [#allocation4], %s274
      %s277 = sshll.u32 [#allocation10], 4
      %s278 = int_to_ptr.vmem [resolvable:$true] %s277
      %280 = dma.vmem_to_hbm [thread:$0]  %s278, 128, %s5, [#allocation4]
    $region41: #{a_call__.1} parent=1 // pred_fallthru
      _
    // Predicated region
    $region42: #{a_call__.1} parent=1 // pred_check
      _
    $region43: #{a_call__.1} parent=1 // pred_check_branch
      %282 = sbr.rel (0) target = $region45
    $region44: #{a_call__.1} parent=1 // pred_region
      %283 = dma.done [#allocation4], 128
    $region45: #{a_call__.1} parent=1 // pred_fallthru
      _
    %284 = vsyncpa [#allocation3], 1
    %285 = vsyncpa [#allocation6], 1
    %286 = vsyncpa [#allocation9], 1
    %287 = vsyncpa [#allocation4], 1

</llo_original>
